<compile_context>
chip_gen: v7x
topology: tpu7x:2x2x1
jax: 0.10.0
libtpu: 0.0.40
codegen_flags: <defaults>
</compile_context>

<pallas_src>
import functools

import jax
import jax.numpy as jnp
from jax import lax
from jax.experimental import pallas as pl
from jax.experimental.pallas import tpu as pltpu

LN_EPS = 1e-5


# ---------------------------------------------------------------------------
# Fused kernel: per (batch, window) grid step
#   LayerNorm (gamma/beta pre-folded) -> fused [k|v|q] projection ->
#   block attention (keys = {previous, current} window held in a persistent
#   2-slot VMEM scratch) -> per-head output-projection accumulate.
# ---------------------------------------------------------------------------
def _attn_block_kernel(x_ref, wqkv_ref, bqkv_ref, wout_ref, o_ref,
                       kbuf_ref, vbuf_ref,
                       *, heads, width, dim_head, compute_dtype):
    j = pl.program_id(1)

    # ---- LayerNorm statistics in f32 (gamma/beta folded into wqkv/bqkv) ----
    x = x_ref[0].astype(jnp.float32)                          # (width, dim)
    mu = jnp.mean(x, axis=-1, keepdims=True)
    var = jnp.mean((x - mu) ** 2, axis=-1, keepdims=True)
    xn = ((x - mu) * lax.rsqrt(var + LN_EPS)).astype(compute_dtype)

    # ---- fused projection: one MXU matmul, columns = [k | v | q*scale] -----
    qkv = jnp.dot(xn, wqkv_ref[...],
                  preferred_element_type=jnp.float32) + bqkv_ref[...]
    k = qkv[:, :dim_head].astype(compute_dtype)               # (width, d)
    v = qkv[:, dim_head:2 * dim_head].astype(compute_dtype)   # (width, d)

    # ---- persistent 2-slot KV scratch: {previous, current} window ----------
    # Softmax attention is permutation-invariant over keys (values follow the
    # same permutation), so slot order is irrelevant.
    @pl.when(j == 0)
    def _():  # the "previous window" of the first block is all zeros
        kbuf_ref[width:, :] = jnp.zeros((width, dim_head), compute_dtype)
        vbuf_ref[width:, :] = jnp.zeros((width, dim_head), compute_dtype)

    cur_in_slot0 = lax.rem(j, 2) == 0

    @pl.when(cur_in_slot0)
    def _():
        kbuf_ref[:width, :] = k
        vbuf_ref[:width, :] = v

    @pl.when(jnp.logical_not(cur_in_slot0))
    def _():
        kbuf_ref[width:, :] = k
        vbuf_ref[width:, :] = v

    kcat = kbuf_ref[...]                                       # (2*width, d)
    vcat = vbuf_ref[...]                                       # (2*width, d)

    # ---- per-head attention + output-projection accumulate -----------------
    q_off = 2 * dim_head
    out_acc = None
    for h in range(heads):
        q_h = qkv[:, q_off + h * dim_head:
                     q_off + (h + 1) * dim_head].astype(compute_dtype)
        # q_h @ kcat^T  (scale already folded into the q weight columns)
        sim = lax.dot_general(q_h, kcat, (((1,), (1,)), ((), ())),
                              preferred_element_type=jnp.float32)  # (w, 2w)
        m = jnp.max(sim, axis=-1, keepdims=True)
        p = jnp.exp(sim - m)
        l = jnp.sum(p, axis=-1, keepdims=True)
        pv = jnp.dot(p.astype(compute_dtype), vcat,
                     preferred_element_type=jnp.float32)           # (w, d)
        o_h = (pv * pl.reciprocal(l, approx=True)).astype(compute_dtype)
        contrib = jnp.dot(o_h, wout_ref[h],
                          preferred_element_type=jnp.float32)      # (w, dim)
        out_acc = contrib if out_acc is None else out_acc + contrib

    o_ref[0] = out_acc.astype(o_ref.dtype)


# ---------------------------------------------------------------------------
# Param prep: fold LayerNorm gamma/beta and the attention scale into the
# fused projection; cast weights to the MXU compute dtype.
# ---------------------------------------------------------------------------
def prepare_params(raw, dim_head, compute_dtype=jnp.bfloat16):
    dim, inner = raw["wq"].shape
    heads = inner // dim_head
    scale = dim_head ** -0.5
    # column order [k | v | q*scale]; scale applies to the whole q path.
    w_cols = jnp.concatenate(
        [raw["wkv"][:, :dim_head], raw["wkv"][:, dim_head:], raw["wq"] * scale],
        axis=1)                                                # (dim, 2d+inner)
    # (xn*gamma + beta) @ W == xn @ (gamma[:,None]*W) + beta @ W
    wqkv = (raw["gamma"][:, None] * w_cols).astype(compute_dtype)
    bqkv = (raw["beta"] @ w_cols).reshape(1, -1).astype(jnp.float32)
    wout = raw["wout"].reshape(heads, dim_head, dim).astype(compute_dtype)
    return {"wqkv": wqkv, "bqkv": bqkv, "wout": wout}


# ---------------------------------------------------------------------------
# AttentionBlock.forward (non-recurrent path)
# ---------------------------------------------------------------------------
def attention_block_forward(x, prepared, *, block_width, heads, dim_head,
                            compute_dtype=jnp.bfloat16):
    b, seq_len, dim = x.shape
    width = block_width

    # pad seq to a multiple of block_width (pad_at_dim with zeros)
    pad = (-seq_len) % width
    if pad:
        x = jnp.pad(x, ((0, 0), (0, pad), (0, 0)))
    n = x.shape[1]
    nw = n // width
    ncols = 2 * dim_head + heads * dim_head

    kernel = functools.partial(_attn_block_kernel, heads=heads, width=width,
                               dim_head=dim_head, compute_dtype=compute_dtype)

    # VMEM budget derived from actual resident buffers (+headroom), instead of
    # a hard-coded constant (matters on v7x's 64 MiB per-TC VMEM).
    cbytes = jnp.dtype(compute_dtype).itemsize
    xbytes = jnp.dtype(x.dtype).itemsize
    est = (2 * width * dim * xbytes                 # double-buffered x block
           + 2 * width * dim * xbytes               # double-buffered out block
           + dim * ncols * cbytes + ncols * 4       # wqkv + bias (single copy)
           + heads * dim_head * dim * cbytes        # wout (single copy)
           + 2 * (2 * width) * dim_head * cbytes    # KV scratch
           + width * ncols * 4                      # qkv intermediate
           + 2 * width * (2 * width) * 4            # sim / p (one head live)
           + 2 * width * dim * 4)                   # out accumulator
    vmem_limit = int(min(max(2 * est + (4 << 20), 16 << 20), 100 << 20))

    out = pl.pallas_call(
        kernel,
        grid=(b, nw),
        in_specs=[
            pl.BlockSpec((1, width, dim), lambda i, j: (i, j, 0)),    # x window
            pl.BlockSpec(memory_space=pltpu.MemorySpace.VMEM),        # wqkv
            pl.BlockSpec(memory_space=pltpu.MemorySpace.VMEM),        # bqkv
            pl.BlockSpec(memory_space=pltpu.MemorySpace.VMEM),        # wout
        ],
        out_specs=pl.BlockSpec((1, width, dim), lambda i, j: (i, j, 0)),
        out_shape=jax.ShapeDtypeStruct((b, n, dim), x.dtype),
        scratch_shapes=[
            pltpu.VMEM((2 * width, dim_head), compute_dtype),   # K {prev,cur}
            pltpu.VMEM((2 * width, dim_head), compute_dtype),   # V {prev,cur}
        ],
        compiler_params=pltpu.CompilerParams(
            # window axis must be sequential (KV carry, reset at j==0);
            # batch axis can shard across TensorCores on v7x.
            dimension_semantics=("parallel", "arbitrary"),
            vmem_limit_bytes=vmem_limit,
        ),
    )(x, prepared["wqkv"], prepared["bqkv"], prepared["wout"])

    out = out[:, :seq_len]

    memories = None     # return_memories_and_states is None -> no memories
    new_states = None   # TODO(synk): recurrent-state branch (num_state_vectors>0) not translated
    return out, memories, new_states


# ---------------------------------------------------------------------------
# Pure-JAX f32 reference (mirrors the PyTorch forward) for correctness check
# ---------------------------------------------------------------------------
def reference_forward(x, params, *, block_width, heads, dim_head):
    b, seq_len, dim = x.shape
    width = block_width
    inner = heads * dim_head
    pad = (-seq_len) % width
    xp = jnp.pad(x, ((0, 0), (0, pad), (0, 0))) if pad else x
    mu = jnp.mean(xp, -1, keepdims=True)
    var = jnp.mean((xp - mu) ** 2, -1, keepdims=True)
    xn = (xp - mu) / jnp.sqrt(var + LN_EPS) * params["gamma"] + params["beta"]
    q = xn @ params["wq"]
    kv = xn @ params["wkv"]
    k, v = kv[..., :dim_head], kv[..., dim_head:]
    n = xp.shape[1]
    nw = n // width
    qb = q.reshape(b, n, heads, dim_head).transpose(0, 2, 1, 3)
    qb = qb.reshape(b, heads, nw, width, dim_head).transpose(0, 2, 1, 3, 4)
    kb = k.reshape(b, nw, width, dim_head)
    vb = v.reshape(b, nw, width, dim_head)
    kb_p = jnp.pad(kb, ((0, 0), (1, 0), (0, 0), (0, 0)))
    vb_p = jnp.pad(vb, ((0, 0), (1, 0), (0, 0), (0, 0)))
    kc = jnp.concatenate([kb_p[:, :-1], kb_p[:, 1:]], axis=-2)
    vc = jnp.concatenate([vb_p[:, :-1], vb_p[:, 1:]], axis=-2)
    scale = dim_head ** -0.5
    sim = jnp.einsum('bwhid,bwjd->bwhij', qb, kc) * scale
    attn = jax.nn.softmax(sim, axis=-1)
    o = jnp.einsum('bwhij,bwjd->bwhid', attn, vc)
    o = o.transpose(0, 1, 3, 2, 4).reshape(b, n, inner)[:, :seq_len]
    return o @ params["wout"]


# ---------------------------------------------------------------------------
if __name__ == "__main__":
    # small config consistent with the module
    batch, seq_len, dim = 2, 16, 32
    block_width, heads, dim_head = 8, 2, 8
    inner = heads * dim_head

    key = jax.random.PRNGKey(0)
    kx, kq, kkv, ko, kg = jax.random.split(key, 5)

    x = jax.random.normal(kx, (batch, seq_len, dim), dtype=jnp.float32)

    def linear_w(k, fan_in, fan_out):
        bound = 1.0 / (fan_in ** 0.5)
        return jax.random.uniform(k, (fan_in, fan_out), jnp.float32, -bound, bound)

    params = {
        # gamma is a learnable LN parameter (exercise the gamma fold with a
        # non-trivial value); beta is a fixed zero buffer in the module.
        "gamma": 1.0 + 0.1 * jax.random.normal(kg, (dim,), jnp.float32),
        "beta": jnp.zeros((dim,), jnp.float32),
        "wq": linear_w(kq, dim, inner),
        "wkv": linear_w(kkv, dim, 2 * dim_head),
        "wout": linear_w(ko, inner, dim),
    }
    prepared = prepare_params(params, dim_head, compute_dtype=jnp.bfloat16)

    out, memories, new_states = attention_block_forward(
        x, prepared, block_width=block_width, heads=heads, dim_head=dim_head,
        compute_dtype=jnp.bfloat16)
    out = jax.block_until_ready(out)

    ref = reference_forward(
        x, params, block_width=block_width, heads=heads, dim_head=dim_head)
    ref = jax.block_until_ready(ref)

    assert out.shape == (batch, seq_len, dim)
    # bf16 MXU operands + approx reciprocal -> compare against f32 reference
    # with a bf16-appropriate tolerance.
    max_err = jnp.max(jnp.abs(out - ref))
    assert jnp.allclose(out, ref, atol=5e-2, rtol=5e-2), f"max abs err {max_err}"

    print("KERNEL_OK")
</pallas_src>

<mosaic_0001>
module attributes {stable_mosaic.version = 11 : i64} {
  func.func @_attn_block_kernel(%arg0: i32, %arg1: i32, %arg2: memref<1x8x32xf32, #tpu.memory_space<vmem>>, %arg3: memref<32x32xbf16, #tpu.memory_space<vmem>>, %arg4: memref<1x32xf32, #tpu.memory_space<vmem>>, %arg5: memref<2x8x32xbf16, #tpu.memory_space<vmem>>, %arg6: memref<1x8x32xf32, #tpu.memory_space<vmem>>, %arg7: memref<16x8xbf16, #tpu.memory_space<vmem>>, %arg8: memref<16x8xbf16, #tpu.memory_space<vmem>>) attributes {dimension_semantics = [#tpu.dimension_semantics<parallel>, #tpu.dimension_semantics<arbitrary>], iteration_bounds = array<i64: 2, 2>, scalar_prefetch = 0 : i64, scratch_operands = 2 : i64, tpu.core_type = #tpu.core_type<tc>, window_params = [{transform_indices = @transform_0, window_bounds = array<i64: 1, 8, 32>}, {pipeline_mode = #tpu.pipeline_mode<synchronous>, transform_indices = @transform_1, window_bounds = array<i64: 32, 32>}, {pipeline_mode = #tpu.pipeline_mode<synchronous>, transform_indices = @transform_2, window_bounds = array<i64: 1, 32>}, {pipeline_mode = #tpu.pipeline_mode<synchronous>, transform_indices = @transform_3, window_bounds = array<i64: 2, 8, 32>}, {transform_indices = @transform_4, window_bounds = array<i64: 1, 8, 32>}]} {
    %c0 = arith.constant 0 : index
    %c0_0 = arith.constant 0 : index
    %c0_1 = arith.constant 0 : index
    %0 = vector.load %arg2[%c0, %c0_0, %c0_1] : memref<1x8x32xf32, #tpu.memory_space<vmem>>, vector<1x8x32xf32>
    %1 = vector.shape_cast %0 : vector<1x8x32xf32> to vector<8x32xf32>
    %cst = arith.constant dense<0.000000e+00> : vector<8xf32>
    %2 = vector.multi_reduction <add>, %1, %cst [1] : vector<8x32xf32> to vector<8xf32>
    %3 = vector.shape_cast %2 : vector<8xf32> to vector<8x1xf32>
    %cst_2 = arith.constant 3.200000e+01 : f32
    %4 = vector.broadcast %cst_2 : f32 to vector<8x1xf32>
    %5 = arith.divf %3, %4 : vector<8x1xf32>
    %6 = vector.broadcast %5 : vector<8x1xf32> to vector<8x32xf32>
    %7 = arith.subf %1, %6 : vector<8x32xf32>
    %8 = arith.mulf %7, %7 : vector<8x32xf32>
    %cst_3 = arith.constant dense<0.000000e+00> : vector<8xf32>
    %9 = vector.multi_reduction <add>, %8, %cst_3 [1] : vector<8x32xf32> to vector<8xf32>
    %10 = vector.shape_cast %9 : vector<8xf32> to vector<8x1xf32>
    %cst_4 = arith.constant 3.200000e+01 : f32
    %11 = vector.broadcast %cst_4 : f32 to vector<8x1xf32>
    %12 = arith.divf %10, %11 : vector<8x1xf32>
    %13 = vector.broadcast %5 : vector<8x1xf32> to vector<8x32xf32>
    %14 = arith.subf %1, %13 : vector<8x32xf32>
    %cst_5 = arith.constant 9.99999974E-6 : f32
    %15 = vector.broadcast %cst_5 : f32 to vector<8x1xf32>
    %16 = arith.addf %12, %15 : vector<8x1xf32>
    %17 = math.rsqrt %16 : vector<8x1xf32>
    %18 = vector.broadcast %17 : vector<8x1xf32> to vector<8x32xf32>
    %19 = arith.mulf %14, %18 : vector<8x32xf32>
    %20 = arith.truncf %19 : vector<8x32xf32> to vector<8x32xbf16>
    %c0_6 = arith.constant 0 : index
    %c0_7 = arith.constant 0 : index
    %21 = vector.load %arg3[%c0_6, %c0_7] : memref<32x32xbf16, #tpu.memory_space<vmem>>, vector<32x32xbf16>
    %cst_8 = arith.constant dense<0.000000e+00> : vector<8x32xf32>
    %22 = tpu.matmul %20, %21, %cst_8 {dimension_numbers = #tpu.dot_dimension_numbers<[1], [0], [0], [1], [0, 0, 1, 1], [], []>} : vector<8x32xbf16>, vector<32x32xbf16>, vector<8x32xf32> -> vector<8x32xf32>
    %c0_9 = arith.constant 0 : index
    %c0_10 = arith.constant 0 : index
    %23 = vector.load %arg4[%c0_9, %c0_10] : memref<1x32xf32, #tpu.memory_space<vmem>>, vector<1x32xf32>
    %24 = vector.broadcast %23 : vector<1x32xf32> to vector<8x32xf32>
    %25 = arith.addf %22, %24 : vector<8x32xf32>
    %26 = vector.extract_strided_slice %25 {offsets = [0, 0], sizes = [8, 8], strides = [1, 1]} : vector<8x32xf32> to vector<8x8xf32>
    %27 = arith.truncf %26 : vector<8x8xf32> to vector<8x8xbf16>
    %28 = vector.extract_strided_slice %25 {offsets = [0, 8], sizes = [8, 8], strides = [1, 1]} : vector<8x32xf32> to vector<8x8xf32>
    %29 = arith.truncf %28 : vector<8x8xf32> to vector<8x8xbf16>
    %c0_i32 = arith.constant 0 : i32
    %30 = arith.cmpi eq, %arg1, %c0_i32 : i32
    %31 = arith.extui %30 : i1 to i32
    %c0_i32_11 = arith.constant 0 : i32
    %32 = arith.cmpi ne, %31, %c0_i32_11 : i32
    scf.if %32 {
      %cst_37 = arith.constant 0.000000e+00 : bf16
      %84 = vector.broadcast %cst_37 : bf16 to vector<8x8xbf16>
      %c8 = arith.constant 8 : index
      %c0_38 = arith.constant 0 : index
      %85 = vector.load %arg7[%c8, %c0_38] : memref<16x8xbf16, #tpu.memory_space<vmem>>, vector<8x8xbf16>
      tpu.vector_store %arg7[%c8, %c0_38], %84 {strides = array<i32>} : memref<16x8xbf16, #tpu.memory_space<vmem>>, vector<8x8xbf16>,
      %cst_39 = arith.constant 0.000000e+00 : bf16
      %86 = vector.broadcast %cst_39 : bf16 to vector<8x8xbf16>
      %c8_40 = arith.constant 8 : index
      %c0_41 = arith.constant 0 : index
      %87 = vector.load %arg8[%c8_40, %c0_41] : memref<16x8xbf16, #tpu.memory_space<vmem>>, vector<8x8xbf16>
      tpu.vector_store %arg8[%c8_40, %c0_41], %86 {strides = array<i32>} : memref<16x8xbf16, #tpu.memory_space<vmem>>, vector<8x8xbf16>,
    } else {
    }
    %c2_i32 = arith.constant 2 : i32
    %33 = arith.remsi %arg1, %c2_i32 : i32
    %c0_i32_12 = arith.constant 0 : i32
    %34 = arith.cmpi eq, %33, %c0_i32_12 : i32
    %35 = arith.extui %34 : i1 to i32
    %c0_i32_13 = arith.constant 0 : i32
    %36 = arith.cmpi ne, %35, %c0_i32_13 : i32
    scf.if %36 {
      %c0_37 = arith.constant 0 : index
      %c0_38 = arith.constant 0 : index
      %84 = vector.load %arg7[%c0_37, %c0_38] : memref<16x8xbf16, #tpu.memory_space<vmem>>, vector<8x8xbf16>
      tpu.vector_store %arg7[%c0_37, %c0_38], %27 {strides = array<i32>} : memref<16x8xbf16, #tpu.memory_space<vmem>>, vector<8x8xbf16>,
      %c0_39 = arith.constant 0 : index
      %c0_40 = arith.constant 0 : index
      %85 = vector.load %arg8[%c0_39, %c0_40] : memref<16x8xbf16, #tpu.memory_space<vmem>>, vector<8x8xbf16>
      tpu.vector_store %arg8[%c0_39, %c0_40], %29 {strides = array<i32>} : memref<16x8xbf16, #tpu.memory_space<vmem>>, vector<8x8xbf16>,
    } else {
    }
    %true = arith.constant true
    %37 = arith.xori %34, %true : i1
    %38 = arith.extui %37 : i1 to i32
    %c0_i32_14 = arith.constant 0 : i32
    %39 = arith.cmpi ne, %38, %c0_i32_14 : i32
    scf.if %39 {
      %c8 = arith.constant 8 : index
      %c0_37 = arith.constant 0 : index
      %84 = vector.load %arg7[%c8, %c0_37] : memref<16x8xbf16, #tpu.memory_space<vmem>>, vector<8x8xbf16>
      tpu.vector_store %arg7[%c8, %c0_37], %27 {strides = array<i32>} : memref<16x8xbf16, #tpu.memory_space<vmem>>, vector<8x8xbf16>,
      %c8_38 = arith.constant 8 : index
      %c0_39 = arith.constant 0 : index
      %85 = vector.load %arg8[%c8_38, %c0_39] : memref<16x8xbf16, #tpu.memory_space<vmem>>, vector<8x8xbf16>
      tpu.vector_store %arg8[%c8_38, %c0_39], %29 {strides = array<i32>} : memref<16x8xbf16, #tpu.memory_space<vmem>>, vector<8x8xbf16>,
    } else {
    }
    %c0_15 = arith.constant 0 : index
    %c0_16 = arith.constant 0 : index
    %40 = vector.load %arg7[%c0_15, %c0_16] : memref<16x8xbf16, #tpu.memory_space<vmem>>, vector<16x8xbf16>
    %c0_17 = arith.constant 0 : index
    %c0_18 = arith.constant 0 : index
    %41 = vector.load %arg8[%c0_17, %c0_18] : memref<16x8xbf16, #tpu.memory_space<vmem>>, vector<16x8xbf16>
    %42 = vector.extract_strided_slice %25 {offsets = [0, 16], sizes = [8, 8], strides = [1, 1]} : vector<8x32xf32> to vector<8x8xf32>
    %43 = arith.truncf %42 : vector<8x8xf32> to vector<8x8xbf16>
    %cst_19 = arith.constant dense<0.000000e+00> : vector<8x16xf32>
    %44 = tpu.matmul %43, %40, %cst_19 {dimension_numbers = #tpu.dot_dimension_numbers<[1], [1], [0], [0], [0, 0, 1, 0], [], []>} : vector<8x8xbf16>, vector<16x8xbf16>, vector<8x16xf32> -> vector<8x16xf32>
    %cst_20 = arith.constant dense<0xFF800000> : vector<8xf32>
    %45 = vector.multi_reduction <maximumf>, %44, %cst_20 [1] : vector<8x16xf32> to vector<8xf32>
    %46 = vector.shape_cast %45 : vector<8xf32> to vector<8x1xf32>
    %47 = vector.broadcast %46 : vector<8x1xf32> to vector<8x16xf32>
    %48 = arith.subf %44, %47 : vector<8x16xf32>
    %49 = math.exp %48 : vector<8x16xf32>
    %cst_21 = arith.constant dense<0.000000e+00> : vector<8xf32>
    %50 = vector.multi_reduction <add>, %49, %cst_21 [1] : vector<8x16xf32> to vector<8xf32>
    %51 = vector.shape_cast %50 : vector<8xf32> to vector<8x1xf32>
    %52 = arith.truncf %49 : vector<8x16xf32> to vector<8x16xbf16>
    %cst_22 = arith.constant dense<0.000000e+00> : vector<8x8xf32>
    %53 = tpu.matmul %52, %41, %cst_22 {dimension_numbers = #tpu.dot_dimension_numbers<[1], [0], [0], [1], [0, 0, 1, 1], [], []>} : vector<8x16xbf16>, vector<16x8xbf16>, vector<8x8xf32> -> vector<8x8xf32>
    %54 = tpu.reciprocal %51 {approx = true} : vector<8x1xf32> -> vector<8x1xf32>
    %55 = vector.broadcast %54 : vector<8x1xf32> to vector<8x8xf32>
    %56 = arith.mulf %53, %55 : vector<8x8xf32>
    %57 = arith.truncf %56 : vector<8x8xf32> to vector<8x8xbf16>
    %c0_23 = arith.constant 0 : index
    %c0_24 = arith.constant 0 : index
    %c0_25 = arith.constant 0 : index
    %58 = vector.load %arg5[%c0_23, %c0_24, %c0_25] : memref<2x8x32xbf16, #tpu.memory_space<vmem>>, vector<1x8x32xbf16>
    %59 = vector.shape_cast %58 : vector<1x8x32xbf16> to vector<8x32xbf16>
    %cst_26 = arith.constant dense<0.000000e+00> : vector<8x32xf32>
    %60 = tpu.matmul %57, %59, %cst_26 {dimension_numbers = #tpu.dot_dimension_numbers<[1], [0], [0], [1], [0, 0, 1, 1], [], []>} : vector<8x8xbf16>, vector<8x32xbf16>, vector<8x32xf32> -> vector<8x32xf32>
    %61 = vector.extract_strided_slice %25 {offsets = [0, 24], sizes = [8, 8], strides = [1, 1]} : vector<8x32xf32> to vector<8x8xf32>
    %62 = arith.truncf %61 : vector<8x8xf32> to vector<8x8xbf16>
    %cst_27 = arith.constant dense<0.000000e+00> : vector<8x16xf32>
    %63 = tpu.matmul %62, %40, %cst_27 {dimension_numbers = #tpu.dot_dimension_numbers<[1], [1], [0], [0], [0, 0, 1, 0], [], []>} : vector<8x8xbf16>, vector<16x8xbf16>, vector<8x16xf32> -> vector<8x16xf32>
    %cst_28 = arith.constant dense<0xFF800000> : vector<8xf32>
    %64 = vector.multi_reduction <maximumf>, %63, %cst_28 [1] : vector<8x16xf32> to vector<8xf32>
    %65 = vector.shape_cast %64 : vector<8xf32> to vector<8x1xf32>
    %66 = vector.broadcast %65 : vector<8x1xf32> to vector<8x16xf32>
    %67 = arith.subf %63, %66 : vector<8x16xf32>
    %68 = math.exp %67 : vector<8x16xf32>
    %cst_29 = arith.constant dense<0.000000e+00> : vector<8xf32>
    %69 = vector.multi_reduction <add>, %68, %cst_29 [1] : vector<8x16xf32> to vector<8xf32>
    %70 = vector.shape_cast %69 : vector<8xf32> to vector<8x1xf32>
    %71 = arith.truncf %68 : vector<8x16xf32> to vector<8x16xbf16>
    %cst_30 = arith.constant dense<0.000000e+00> : vector<8x8xf32>
    %72 = tpu.matmul %71, %41, %cst_30 {dimension_numbers = #tpu.dot_dimension_numbers<[1], [0], [0], [1], [0, 0, 1, 1], [], []>} : vector<8x16xbf16>, vector<16x8xbf16>, vector<8x8xf32> -> vector<8x8xf32>
    %73 = tpu.reciprocal %70 {approx = true} : vector<8x1xf32> -> vector<8x1xf32>
    %74 = vector.broadcast %73 : vector<8x1xf32> to vector<8x8xf32>
    %75 = arith.mulf %72, %74 : vector<8x8xf32>
    %76 = arith.truncf %75 : vector<8x8xf32> to vector<8x8xbf16>
    %c1 = arith.constant 1 : index
    %c0_31 = arith.constant 0 : index
    %c0_32 = arith.constant 0 : index
    %77 = vector.load %arg5[%c1, %c0_31, %c0_32] : memref<2x8x32xbf16, #tpu.memory_space<vmem>>, vector<1x8x32xbf16>
    %78 = vector.shape_cast %77 : vector<1x8x32xbf16> to vector<8x32xbf16>
    %cst_33 = arith.constant dense<0.000000e+00> : vector<8x32xf32>
    %79 = tpu.matmul %76, %78, %cst_33 {dimension_numbers = #tpu.dot_dimension_numbers<[1], [0], [0], [1], [0, 0, 1, 1], [], []>} : vector<8x8xbf16>, vector<8x32xbf16>, vector<8x32xf32> -> vector<8x32xf32>
    %80 = arith.addf %60, %79 : vector<8x32xf32>
    %c0_34 = arith.constant 0 : index
    %c0_35 = arith.constant 0 : index
    %c0_36 = arith.constant 0 : index
    %81 = vector.load %arg6[%c0_34, %c0_35, %c0_36] : memref<1x8x32xf32, #tpu.memory_space<vmem>>, vector<1x8x32xf32>
    %82 = vector.shape_cast %81 : vector<1x8x32xf32> to vector<8x32xf32>
    %83 = vector.shape_cast %80 : vector<8x32xf32> to vector<1x8x32xf32>
    tpu.vector_store %arg6[%c0_34, %c0_35, %c0_36], %83 {strides = array<i32>} : memref<1x8x32xf32, #tpu.memory_space<vmem>>, vector<1x8x32xf32>,
    return
  }
  func.func @transform_0(%arg0: i32, %arg1: i32) -> (i32, i32, i32) {
    %c0_i32 = arith.constant 0 : i32
    %c0_i32_0 = arith.constant 0 : i32
    return %arg0, %arg1, %c0_i32 : i32, i32, i32
  }
  func.func @transform_1(%arg0: i32, %arg1: i32) -> (i32, i32) {
    %c0_i32 = arith.constant 0 : i32
    %c0_i32_0 = arith.constant 0 : i32
    %c0_i32_1 = arith.constant 0 : i32
    return %c0_i32, %c0_i32_0 : i32, i32
  }
  func.func @transform_2(%arg0: i32, %arg1: i32) -> (i32, i32) {
    %c0_i32 = arith.constant 0 : i32
    %c0_i32_0 = arith.constant 0 : i32
    %c0_i32_1 = arith.constant 0 : i32
    return %c0_i32, %c0_i32_0 : i32, i32
  }
  func.func @transform_3(%arg0: i32, %arg1: i32) -> (i32, i32, i32) {
    %c0_i32 = arith.constant 0 : i32
    %c0_i32_0 = arith.constant 0 : i32
    %c0_i32_1 = arith.constant 0 : i32
    %c0_i32_2 = arith.constant 0 : i32
    return %c0_i32, %c0_i32_0, %c0_i32_1 : i32, i32, i32
  }
  func.func @transform_4(%arg0: i32, %arg1: i32) -> (i32, i32, i32) {
    %c0_i32 = arith.constant 0 : i32
    %c0_i32_0 = arith.constant 0 : i32
    return %arg0, %arg1, %c0_i32 : i32, i32, i32
  }
}

</mosaic_0001>

<llo_original>
// kernel: tpu_custom_call.1
$region0: #{tpu_custom_call.1}
  #allocation0 [shape = 'u32[]', space=smem, size = 0x4, offset = 0x4, fixed_abs, tag = 'smem constant byte address 0x4 - core index']
  #allocation1 [shape = 'u32[144,128]{1,0:T(1,128)}', space=vmem, size = 0x12000, scoped, tag = 'internal scratch']
  #allocation2 [shape = 'bf16[16,8]{1,0:T(16,128)(2,1)}', space=vmem, size = 0x1000, scoped, tag = 'scratch operand']
  #allocation3 [shape = 'bf16[16,8]{1,0:T(16,128)(2,1)}', space=vmem, size = 0x1000, scoped, tag = 'scratch operand']
  %s0 = inlined_call_operand.hbm [shape: f32[2,16,32], index: 0, kind: input, shape index: {}]
  %s1 = inlined_call_operand.hbm [shape: bf16[32,32], index: 1, kind: input, shape index: {}]
  %s2 = inlined_call_operand.vmem [shape: f32[1,32], index: 2, kind: input, shape index: {}]
  %s3 = inlined_call_operand.vmem [shape: bf16[2,8,32], index: 3, kind: input, shape index: {}]
  %s4 = inlined_call_operand.hbm [shape: f32[2,16,32], index: 4, kind: output, shape index: {}]
  %s5 = sld [smem:[#allocation0]]
  $region69: #{tpu_custom_call.1} parent=0
    _
  %s7 = ssub.s32 1, %s5
  %s8 = scalar_select 0, %s7, %s5
  $region1: #{tpu_custom_call.1} parent=0
    #allocation4 [shape = 'u8[8192]{0}', space=vmem, size = 0x2000, scoped, tag = 'input window, operand 0']
    #allocation5 [shape = 's32[2]{0}', space=sflag, size = 0x8, scoped, tag = 'scoped memory for tpu_custom_call.1']
    #allocation6 [shape = 's32[2]{0}', space=sflag, size = 0x8, scoped, tag = 'scoped memory for tpu_custom_call.1']
    #allocation7 [shape = 'u8[8192]{0}', space=vmem, size = 0x2000, scoped, tag = 'input window, operand 1, single buffered']
    #allocation8 [shape = 's32[1]{0}', space=sflag, size = 0x4, scoped, tag = 'scoped memory for tpu_custom_call.1']
    #allocation9 [shape = 'u8[8192]{0}', space=vmem, size = 0x2000, scoped, tag = 'output window, operand 0']
    %9 = vsyncpa [#allocation5], 0
    %s10 = scalar_lea.sflag [#allocation5], 1
    %11 = vsyncpa %s10, 0
    %12 = vsyncpa [#allocation8], 0
    %13 = vsyncpa [#allocation6], 0
    %s14 = scalar_lea.sflag [#allocation6], 1
    %15 = vsyncpa %s14, 0
    loop: start=0, step=1, limit=6
    $region2: #{tpu_custom_call.1} parent=1 // loop_pre_header
      _
    $region3: #{tpu_custom_call.1} parent=1 // loop_header
      %s17 = sphi 0, %s21
      %p18 = scmp.ge.s32.totalorder %s17, 6
      %s24 = sphi 0, %s36
      %s25 = sphi 0, %s32
      %s26 = sphi 0, %s24
      %s27 = sphi 0, %s25
      %s28 = sphi 0, %s26
      %s29 = sphi 0, %s27
      %s41 = sphi 0, %s43
      %s44 = sphi 0, %s41
      %s45 = sphi 0, %s44
      %s61 = sphi 0, %s45
      %s65 = sphi 0, %s65
      %s67 = sphi 0, %s65
      %s68 = sphi 0, %s67
      %s82 = sphi 0, %s68
      %s86 = sphi 0, %s86
      %s88 = sphi 0, %s86
      %s89 = sphi 0, %s88
      %s103 = sphi 0, %s89
      %s107 = sphi 0, %s107
      %s109 = sphi 0, %s107
      %s110 = sphi 0, %s109
      %s124 = sphi 0, %s110
      %s132 = sphi 0, %s134
      %s135 = sphi 0, %s132
      %s136 = sphi 0, %s135
      %s152 = sphi 0, %s136
    $region4: #{tpu_custom_call.1} parent=1 // loop_header_branch
      %20 = sbr.rel (%p18) target = $region8
    $region5: #{tpu_custom_call.1} parent=1 // loop_body
      %s22 = ssub.s32 %s17, 1
      %s23 = ssub.s32 %s17, 2
      %s30 = sadd.s32 1, %s25
      %p31 = scmp.ge.s32.totalorder %s30, 2
      %s32 = scalar_select %p31, 0, %s30
      %s33 = sadd.s32 1, %s24
      %s34 = scalar_select %p31, %s33, %s24
      %p35 = scmp.ge.s32.totalorder %s34, 2
      %s36 = scalar_select %p35, 0, %s34
      %s37 = ssub.s32 %s24, %s36
      %s38 = ssub.s32 %s25, %s32
      %s39 = sor.u32 %s37, %s38
      %p40 = scmp.eq.s32.totalorder %s39, 0
      %s42 = sadd.s32 %s41, 1
      %s43 = scalar_select %p40, %s41, %s42
      %p46 = pneg %p40
      %p47 = scmp.eq.s32.totalorder %s17, 3
      %p48 = por %p46, %p47
      %p49 = scmp.ne.s32.totalorder %s41, %s44
      %p50 = scmp.eq.s32.totalorder %s17, 0
      %p51 = por %p49, %p50
      %p52 = scmp.ne.s32.totalorder %s41, %s44
      %p53 = scmp.eq.s32.totalorder %s22, 3
      %p54 = por %p52, %p53
      %p55 = scmp.ne.s32.totalorder %s44, %s45
      %p56 = scmp.eq.s32.totalorder %s22, 0
      %p57 = por %p55, %p56
      %p58 = scmp.ne.s32.totalorder %s44, %s45
      %p59 = scmp.eq.s32.totalorder %s23, 3
      %p60 = por %p58, %p59
      %p62 = scmp.ne.s32.totalorder %s45, %s61
      %p63 = scmp.eq.s32.totalorder %s23, 0
      %p64 = por %p62, %p63
      %s66 = sadd.s32 %s65, 1
      %p69 = scmp.eq.s32.totalorder %s17, 3
      %p70 = scmp.ne.s32.totalorder %s65, %s67
      %p71 = scmp.eq.s32.totalorder %s17, 0
      %p72 = por %p70, %p71
      %p73 = scmp.ne.s32.totalorder %s65, %s67
      %p74 = scmp.eq.s32.totalorder %s22, 3
      %p75 = por %p73, %p74
      %p76 = scmp.ne.s32.totalorder %s67, %s68
      %p77 = scmp.eq.s32.totalorder %s22, 0
      %p78 = por %p76, %p77
      %p79 = scmp.ne.s32.totalorder %s67, %s68
      %p80 = scmp.eq.s32.totalorder %s23, 3
      %p81 = por %p79, %p80
      %p83 = scmp.ne.s32.totalorder %s68, %s82
      %p84 = scmp.eq.s32.totalorder %s23, 0
      %p85 = por %p83, %p84
      %s87 = sadd.s32 %s86, 1
      %p90 = scmp.eq.s32.totalorder %s17, 3
      %p91 = scmp.ne.s32.totalorder %s86, %s88
      %p92 = scmp.eq.s32.totalorder %s17, 0
      %p93 = por %p91, %p92
      %p94 = scmp.ne.s32.totalorder %s86, %s88
      %p95 = scmp.eq.s32.totalorder %s22, 3
      %p96 = por %p94, %p95
      %p97 = scmp.ne.s32.totalorder %s88, %s89
      %p98 = scmp.eq.s32.totalorder %s22, 0
      %p99 = por %p97, %p98
      %p100 = scmp.ne.s32.totalorder %s88, %s89
      %p101 = scmp.eq.s32.totalorder %s23, 3
      %p102 = por %p100, %p101
      %p104 = scmp.ne.s32.totalorder %s89, %s103
      %p105 = scmp.eq.s32.totalorder %s23, 0
      %p106 = por %p104, %p105
      %s108 = sadd.s32 %s107, 1
      %p111 = scmp.eq.s32.totalorder %s17, 3
      %p112 = scmp.ne.s32.totalorder %s107, %s109
      %p113 = scmp.eq.s32.totalorder %s17, 0
      %p114 = por %p112, %p113
      %p115 = scmp.ne.s32.totalorder %s107, %s109
      %p116 = scmp.eq.s32.totalorder %s22, 3
      %p117 = por %p115, %p116
      %p118 = scmp.ne.s32.totalorder %s109, %s110
      %p119 = scmp.eq.s32.totalorder %s22, 0
      %p120 = por %p118, %p119
      %p121 = scmp.ne.s32.totalorder %s109, %s110
      %p122 = scmp.eq.s32.totalorder %s23, 3
      %p123 = por %p121, %p122
      %p125 = scmp.ne.s32.totalorder %s110, %s124
      %p126 = scmp.eq.s32.totalorder %s23, 0
      %p127 = por %p125, %p126
      %s128 = ssub.s32 %s24, %s36
      %s129 = ssub.s32 %s25, %s32
      %s130 = sor.u32 %s128, %s129
      %p131 = scmp.eq.s32.totalorder %s130, 0
      %s133 = sadd.s32 %s132, 1
      %s134 = scalar_select %p131, %s132, %s133
      %p137 = pneg %p131
      %p138 = scmp.eq.s32.totalorder %s17, 3
      %p139 = por %p137, %p138
      %p140 = scmp.ne.s32.totalorder %s132, %s135
      %p141 = scmp.eq.s32.totalorder %s17, 0
      %p142 = por %p140, %p141
      %p143 = scmp.ne.s32.totalorder %s132, %s135
      %p144 = scmp.eq.s32.totalorder %s22, 3
      %p145 = por %p143, %p144
      %p146 = scmp.ne.s32.totalorder %s135, %s136
      %p147 = scmp.eq.s32.totalorder %s22, 0
      %p148 = por %p146, %p147
      %p149 = scmp.ne.s32.totalorder %s135, %s136
      %p150 = scmp.eq.s32.totalorder %s23, 3
      %p151 = por %p149, %p150
      %p153 = scmp.ne.s32.totalorder %s136, %s152
      %p154 = scmp.eq.s32.totalorder %s23, 0
      %p155 = por %p153, %p154
      %p156 = scmp.le.s32.totalorder 1, %s17
      %p157 = scmp.lt.s32.totalorder %s17, 5
      %p158 = pnand %p156, %p157
      %p159 = pneg %p158
      // Predicated region
      $region9: #{tpu_custom_call.1} parent=5 // pred_check
        _
      $region10: #{tpu_custom_call.1} parent=5 // pred_check_branch
        %161 = sbr.rel (%p158) target = $region12
      $region11: #{tpu_custom_call.1} parent=5 // pred_region
        %s162 = ssub.s32 %s17, 1
        // Predicated region
        $region13: #{tpu_custom_call.1} parent=11 // pred_check
          %p163 = pneg %p78
        $region14: #{tpu_custom_call.1} parent=11 // pred_check_branch
          %165 = sbr.rel (%p163) target = $region16
        $region15: #{tpu_custom_call.1} parent=11 // pred_region
          %s167 = ssub.s32 256, 256
          %168 = vsyncadd [#allocation8], %s167
          %s169 = sshll.u32 [#allocation7], 4
          %s170 = int_to_ptr.vmem [resolvable:$true] %s169
          %175 = dma.hbm_to_vmem [thread:$0]  %s1, 256, %s170, [#allocation8], 64, 64, 4
        $region16: #{tpu_custom_call.1} parent=11 // pred_fallthru
          _
        // Predicated region
        $region17: #{tpu_custom_call.1} parent=11 // pred_check
          %p176 = pneg %p99
        $region18: #{tpu_custom_call.1} parent=11 // pred_check_branch
          %178 = sbr.rel (%p176) target = $region20
        $region19: #{tpu_custom_call.1} parent=11 // pred_region
          _
        $region20: #{tpu_custom_call.1} parent=11 // pred_fallthru
          _
        // Predicated region
        $region21: #{tpu_custom_call.1} parent=11 // pred_check
          %p179 = pneg %p120
        $region22: #{tpu_custom_call.1} parent=11 // pred_check_branch
          %181 = sbr.rel (%p179) target = $region24
        $region23: #{tpu_custom_call.1} parent=11 // pred_region
          _
        $region24: #{tpu_custom_call.1} parent=11 // pred_fallthru
          _
      $region12: #{tpu_custom_call.1} parent=5 // pred_fallthru
        _
      %p182 = scmp.lt.s32.totalorder %s17, 4
      // Predicated region
      $region25: #{tpu_custom_call.1} parent=5 // pred_check
        %p183 = pneg %p182
      $region26: #{tpu_custom_call.1} parent=5 // pred_check_branch
        %185 = sbr.rel (%p183) target = $region28
      $region27: #{tpu_custom_call.1} parent=5 // pred_region
        // Predicated region
        $region29: #{tpu_custom_call.1} parent=27 // pred_check
          %p186 = pneg %p51
        $region30: #{tpu_custom_call.1} parent=27 // pred_check_branch
          %188 = sbr.rel (%p186) target = $region32
        $region31: #{tpu_custom_call.1} parent=27 // pred_region
          %s189 = sand.u32 %s41, 1
          %s190 = scalar_lea.sflag [#allocation5], %s189
          %s191 = sand.u32 %s41, 1
          %s192 = smul.addr %s191, 8
          %s193 = scalar_lea.vmem [#allocation4], %s192
          %s195 = ssub.s32 128, 128
          %196 = vsyncadd %s190, %s195
          %s197 = smul.addr %s24, 2
          %s198 = sadd.s32 %s25, %s197
          %s199 = smul.addr %s198, 128
          %s200 = scalar_lea.hbm %s0, %s199
          %s202 = sshll.u32 %s193, 4
          %s203 = int_to_ptr.vmem [resolvable:$true] %s202
          %205 = dma.hbm_to_vmem [thread:$0]  %s200, 128, %s203, %s190
        $region32: #{tpu_custom_call.1} parent=27 // pred_fallthru
          _
      $region28: #{tpu_custom_call.1} parent=5 // pred_fallthru
        _
      %p206 = scmp.le.s32.totalorder 1, %s17
      %p207 = scmp.lt.s32.totalorder %s17, 5
      %p208 = pnand %p206, %p207
      %p209 = pneg %p208
      // Predicated region
      $region33: #{tpu_custom_call.1} parent=5 // pred_check
        _
      $region34: #{tpu_custom_call.1} parent=5 // pred_check_branch
        %211 = sbr.rel (%p208) target = $region36
      $region35: #{tpu_custom_call.1} parent=5 // pred_region
        %s212 = ssub.s32 %s17, 1
        %s213 = sand.u32 %s44, 1
        %s214 = scalar_lea.sflag [#allocation5], %s213
        %s215 = sand.u32 %s44, 1
        %s216 = smul.addr %s215, 8
        %s217 = scalar_lea.vmem [#allocation4], %s216
        // Predicated region
        $region37: #{tpu_custom_call.1} parent=35 // pred_check
          %p218 = pneg %p57
        $region38: #{tpu_custom_call.1} parent=35 // pred_check_branch
          %220 = sbr.rel (%p218) target = $region40
        $region39: #{tpu_custom_call.1} parent=35 // pred_region
          %221 = dma.done %s214, 128
        $region40: #{tpu_custom_call.1} parent=35 // pred_fallthru
          _
        // Predicated region
        $region41: #{tpu_custom_call.1} parent=35 // pred_check
          %p222 = pneg %p78
        $region42: #{tpu_custom_call.1} parent=35 // pred_check_branch
          %224 = sbr.rel (%p222) target = $region44
        $region43: #{tpu_custom_call.1} parent=35 // pred_region
          %225 = dma.done [#allocation8], 256
        $region44: #{tpu_custom_call.1} parent=35 // pred_fallthru
          _
        %s226 = sand.u32 %s44, 1
        %s227 = scalar_lea.sflag [#allocation5], %s226
        %s228 = sand.u32 %s44, 1
        %s229 = smul.addr %s228, 8
        %s230 = scalar_lea.vmem [#allocation4], %s229
        %p231 = pneg %p57
        %p232 = pneg %p54
        %p233 = pneg %p78
        %p234 = pneg %p75
        %p235 = pneg %p99
        %p236 = pneg %p96
        %p237 = pneg %p120
        %p238 = pneg %p117
        %p239 = pneg %p148
        %p240 = pneg %p145
        %s241 = sand.u32 %s135, 1
        %s242 = scalar_lea.sflag [#allocation6], %s241
        %s243 = sand.u32 %s135, 1
        %s244 = smul.addr %s243, 8
        %s245 = scalar_lea.vmem [#allocation9], %s244
        %v247 = vld [vmem:[%s217] sm:$0xff]
        %vm248 = vcmask 261120
        %v249 = vsel %vm248, %v247, 0.0
        %250 = vadd.xlane.f32.xlu0 %v249
        %v251 = vpop.xlane.xlu0 %250
        %v252 = vrcp.pop 32.0
        %v253 = vmul.f32 %v251, %v252
        %v254 = vsub.f32 %v247, %v253
        %v255 = vmul.f32 %v254, %v254
        %v256 = vsel %vm248, %v255, 0.0
        %257 = vadd.xlane.f32.xlu0 %v256
        %v258 = vpop.xlane.xlu0 %257
        %v259 = vmul.f32 %v258, %v252
        %v260 = vadd.f32 %v259, 1e-05
        %v261 = vrsqrt.pop %v260
        %v262 = vmul.f32 %v254, %v261
        %v263 = vpack.c.bf16 %v262, %v262
        %v264 = vld [vmem:[#allocation7] sm:$0xf]
        %v265 = vld [vmem:[#allocation7 + $0x4] sm:$0xf]
        %v266 = vld [vmem:[#allocation7 + $0x8] sm:$0xf]
        %v267 = vld [vmem:[#allocation7 + $0xc] sm:$0xf]
        %v268 = vld [vmem:[%s2] sm:$0x1]
        %v270 = vlaneseq
        %v271 = vshrl.u32 %v270, 7
        %v272 = vsub.s32 0, %v271
        %v273 = vrot.slane %v268, %v272
        %v279 = vunpack.c.l.b16 %v264
        %v280 = vunpack.c.l.b16 %v265
        %v281 = vunpack.c.l.b16 %v266
        %v282 = vunpack.c.l.b16 %v267
        %v283 = vpack.c.b16 %v280, %v279
        %v284 = vpack.c.b16 %v282, %v281
        %v288 = vsel %vm248, %v263, 0
        %290 = vmatprep.subr.bf16.mxu0 0
        %291 = vmatpush1.bf16.msra.mxu0 %v283
        %292 = vmatprep.subr.bf16.mxu0 0
        %293 = vmatpush1.bf16.msra.mxu0 %v284
        %294 = vmatprep.subr.bf16.mxu0 0
        %295 = vmatpush1.bf16.msra.mxu0 0
        %296 = vmatprep.subr.bf16.mxu0 0
        %297 = vmatpush1.bf16.msra.mxu0 0
        %298 = vmatprep.subr.bf16.mxu0 0
        %299 = vmatpush1.bf16.msra.mxu0 0
        %300 = vmatprep.subr.bf16.mxu0 0
        %301 = vmatpush1.bf16.msra.mxu0 0
        %302 = vmatprep.subr.bf16.mxu0 0
        %303 = vmatpush1.bf16.msra.mxu0 0
        %304 = vmatprep.subr.bf16.mxu0 0
        %305 = vmatpush1.bf16.msra.mxu0 0
        %306 = vmatprep.subr.bf16.mxu0 0
        %307 = vmatpush1.bf16.msra.mxu0 0
        %308 = vmatprep.subr.bf16.mxu0 0
        %309 = vmatpush1.bf16.msra.mxu0 0
        %310 = vmatprep.subr.bf16.mxu0 0
        %311 = vmatpush1.bf16.msra.mxu0 0
        %312 = vmatprep.subr.bf16.mxu0 0
        %313 = vmatpush1.bf16.msra.mxu0 0
        %314 = vmatprep.subr.bf16.mxu0 0
        %315 = vmatpush1.bf16.msra.mxu0 0
        %316 = vmatprep.subr.bf16.mxu0 0
        %317 = vmatpush1.bf16.msra.mxu0 0
        %318 = vmatprep.subr.bf16.mxu0 0
        %319 = vmatpush1.bf16.msra.mxu0 0
        %320 = vmatprep.subr.bf16.mxu0 0
        %321 = vmatpush1.bf16.msra.mxu0 0
        %322 = vmatprep.mubr.bf16.mxu0 0
        %323 = vmatmul.mubr.bf16.gmra.mrb[0].mxu0 %v288
        %v324 = vpop.f32.mrb[0].mxu0
        %v325 = vadd.f32 %v273, %v324
        %v326 = vpop.f32.mrb[0].mxu0
        %v327 = vpop.f32.mrb[0].mxu0
        %v328 = vpop.f32.mrb[0].mxu0
        %329 = vdwg.mxu0
        %v330 = vpack.c.bf16 %v325, %v325
        %p331 = scmp.eq.s32.totalorder %s27, 0
        // Predicated region
        $region45: #{tpu_custom_call.1} parent=35 // pred_check
          %p332 = pneg %p331
        $region46: #{tpu_custom_call.1} parent=35 // pred_check_branch
          %334 = sbr.rel (%p332) target = $region48
        $region47: #{tpu_custom_call.1} parent=35 // pred_region
          %vm335 = vcmask 64516
          %336 = vst.msk [vmem:[#allocation2] sm:$0xf0] %vm335, 0
          %337 = vst.msk [vmem:[#allocation3] sm:$0xf0] %vm335, 0
        $region48: #{tpu_custom_call.1} parent=35 // pred_fallthru
          _
        %p338 = scmp.lt.s32.totalorder %s27, 0
        %s339 = ssub.s32 0, %s27
        %s340 = scalar_select %p338, %s339, %s27
        %s341 = sand.u32 %s340, 1
        %s342 = ssub.s32 0, %s341
        %s343 = scalar_select %p338, %s342, %s341
        %p344 = scmp.eq.s32.totalorder %s343, 0
        // Predicated region
        $region49: #{tpu_custom_call.1} parent=35 // pred_check
          %p345 = pneg %p344
        $region50: #{tpu_custom_call.1} parent=35 // pred_check_branch
          %347 = sbr.rel (%p345) target = $region52
        $region51: #{tpu_custom_call.1} parent=35 // pred_region
          %vm348 = vcmask 60416
          %349 = vst.msk [vmem:[#allocation2] sm:$0xf] %vm348, %v330
          %351 = vrot.lane.b32.xlu0 %v330, 120
          %v352 = vpop.permute.xlu0 %351
          %354 = vst.msk [vmem:[#allocation3] sm:$0xf] %vm348, %v352
        $region52: #{tpu_custom_call.1} parent=35 // pred_fallthru
          _
        %p355 = scmp.ne.s32.totalorder %s343, 0
        // Predicated region
        $region53: #{tpu_custom_call.1} parent=35 // pred_check
          %p356 = pneg %p355
        $region54: #{tpu_custom_call.1} parent=35 // pred_check_branch
          %358 = sbr.rel (%p356) target = $region56
        $region55: #{tpu_custom_call.1} parent=35 // pred_region
          %v360 = vrot.slane %v330, 4
          %vm362 = vcmask 64516
          %363 = vst.msk [vmem:[#allocation2] sm:$0xf0] %vm362, %v360
          %364 = vrot.lane.b32.xlu0 %v360, 120
          %v365 = vpop.permute.xlu0 %364
          %367 = vst.msk [vmem:[#allocation3] sm:$0xf0] %vm362, %v365
        $region56: #{tpu_custom_call.1} parent=35 // pred_fallthru
          _
        %v368 = vld [vmem:[#allocation2] sm:$0xff]
        %v369 = vld [vmem:[#allocation3] sm:$0xff]
        %371 = vrot.lane.b32.xlu0 %v330, 112
        %v372 = vpop.permute.xlu0 %371
        %vm373 = vcmask 64512
        %v375 = vsel %vm373, %v372, 0
        %v378 = vsel %vm373, %v368, 0
        %380 = vmatprep.subr.bf16.mxu0 0
        %381 = vmatpush1.bf16.xpose.msra.mxu0 %v378
        %382 = vmatprep.subr.bf16.mxu0 0
        %383 = vmatpush1.bf16.xpose.msra.mxu0 0
        %384 = vmatprep.subr.bf16.mxu0 0
        %385 = vmatpush1.bf16.xpose.msra.mxu0 0
        %386 = vmatprep.subr.bf16.mxu0 0
        %387 = vmatpush1.bf16.xpose.msra.mxu0 0
        %388 = vmatprep.subr.bf16.mxu0 0
        %389 = vmatpush1.bf16.xpose.msra.mxu0 0
        %390 = vmatprep.subr.bf16.mxu0 0
        %391 = vmatpush1.bf16.xpose.msra.mxu0 0
        %392 = vmatprep.subr.bf16.mxu0 0
        %393 = vmatpush1.bf16.xpose.msra.mxu0 0
        %394 = vmatprep.subr.bf16.mxu0 0
        %395 = vmatpush1.bf16.xpose.msra.mxu0 0
        %396 = vmatprep.subr.bf16.mxu0 0
        %397 = vmatpush1.bf16.xpose.msra.mxu0 0
        %398 = vmatprep.subr.bf16.mxu0 0
        %399 = vmatpush1.bf16.xpose.msra.mxu0 0
        %400 = vmatprep.subr.bf16.mxu0 0
        %401 = vmatpush1.bf16.xpose.msra.mxu0 0
        %402 = vmatprep.subr.bf16.mxu0 0
        %403 = vmatpush1.bf16.xpose.msra.mxu0 0
        %404 = vmatprep.subr.bf16.mxu0 0
        %405 = vmatpush1.bf16.xpose.msra.mxu0 0
        %406 = vmatprep.subr.bf16.mxu0 0
        %407 = vmatpush1.bf16.xpose.msra.mxu0 0
        %408 = vmatprep.subr.bf16.mxu0 0
        %409 = vmatpush1.bf16.xpose.msra.mxu0 0
        %410 = vmatprep.subr.bf16.mxu0 0
        %411 = vmatpush1.bf16.xpose.msra.mxu0 0
        %412 = vmatprep.mubr.bf16.mxu0 0
        %413 = vmatmul.mubr.bf16.gmra.mrb[0].mxu0 %v375
        %v414 = vpop.f32.mrb[0].mxu0
        %v415 = vadd.f32 0.0, %v414
        %v416 = vpop.f32.mrb[0].mxu0
        %v417 = vpop.f32.mrb[0].mxu0
        %v418 = vpop.f32.mrb[0].mxu0
        %419 = vdwg.mxu0
        %vm420 = vcmask 130048
        %v421 = vsel %vm420, %v415, -inf
        %422 = vmax.xlane.f32.xlu0 %v421
        %v423 = vpop.xlane.xlu0 %422
        %v424 = vsub.f32 %v415, %v423
        %v425 = vmul.f32 %v424, 1.442695
        %v426 = vpow.pop %v425
        %v427 = vsel %vm420, %v426, 0.0
        %428 = vadd.xlane.f32.xlu0 %v427
        %v429 = vpop.xlane.xlu0 %428
        %v430 = vpack.c.bf16 %v426, %v426
        %v432 = vsel %vm420, %v430, 0
        %434 = vmatprep.subr.bf16.mxu0 0
        %435 = vmatpush1.bf16.msra.mxu0 %v369
        %436 = vmatprep.subr.bf16.mxu0 0
        %437 = vmatpush1.bf16.msra.mxu0 0
        %438 = vmatprep.subr.bf16.mxu0 0
        %439 = vmatpush1.bf16.msra.mxu0 0
        %440 = vmatprep.subr.bf16.mxu0 0
        %441 = vmatpush1.bf16.msra.mxu0 0
        %442 = vmatprep.subr.bf16.mxu0 0
        %443 = vmatpush1.bf16.msra.mxu0 0
        %444 = vmatprep.subr.bf16.mxu0 0
        %445 = vmatpush1.bf16.msra.mxu0 0
        %446 = vmatprep.subr.bf16.mxu0 0
        %447 = vmatpush1.bf16.msra.mxu0 0
        %448 = vmatprep.subr.bf16.mxu0 0
        %449 = vmatpush1.bf16.msra.mxu0 0
        %450 = vmatprep.subr.bf16.mxu0 0
        %451 = vmatpush1.bf16.msra.mxu0 0
        %452 = vmatprep.subr.bf16.mxu0 0
        %453 = vmatpush1.bf16.msra.mxu0 0
        %454 = vmatprep.subr.bf16.mxu0 0
        %455 = vmatpush1.bf16.msra.mxu0 0
        %456 = vmatprep.subr.bf16.mxu0 0
        %457 = vmatpush1.bf16.msra.mxu0 0
        %458 = vmatprep.subr.bf16.mxu0 0
        %459 = vmatpush1.bf16.msra.mxu0 0
        %460 = vmatprep.subr.bf16.mxu0 0
        %461 = vmatpush1.bf16.msra.mxu0 0
        %462 = vmatprep.subr.bf16.mxu0 0
        %463 = vmatpush1.bf16.msra.mxu0 0
        %464 = vmatprep.subr.bf16.mxu0 0
        %465 = vmatpush1.bf16.msra.mxu0 0
        %466 = vmatprep.mubr.bf16.mxu0 0
        %467 = vmatmul.mubr.bf16.gmra.mrb[0].mxu0 %v432
        %v468 = vpop.f32.mrb[0].mxu0
        %v469 = vadd.f32 0.0, %v468
        %v470 = vpop.f32.mrb[0].mxu0
        %v471 = vpop.f32.mrb[0].mxu0
        %v472 = vpop.f32.mrb[0].mxu0
        %473 = vdwg.mxu0
        %v474 = vrcp.pop %v429
        %v475 = vmul.f32 %v469, %v474
        %v476 = vpack.c.bf16 %v475, %v475
        %v477 = vld [vmem:[%s3] sm:$0xf]
        %478 = vrot.lane.b32.xlu0 %v330, 104
        %v479 = vpop.permute.xlu0 %478
        %v481 = vsel %vm373, %v479, 0
        %483 = vmatprep.subr.bf16.mxu0 0
        %484 = vmatpush1.bf16.xpose.msra.mxu0 %v378
        %485 = vmatprep.subr.bf16.mxu0 0
        %486 = vmatpush1.bf16.xpose.msra.mxu0 0
        %487 = vmatprep.subr.bf16.mxu0 0
        %488 = vmatpush1.bf16.xpose.msra.mxu0 0
        %489 = vmatprep.subr.bf16.mxu0 0
        %490 = vmatpush1.bf16.xpose.msra.mxu0 0
        %491 = vmatprep.subr.bf16.mxu0 0
        %492 = vmatpush1.bf16.xpose.msra.mxu0 0
        %493 = vmatprep.subr.bf16.mxu0 0
        %494 = vmatpush1.bf16.xpose.msra.mxu0 0
        %495 = vmatprep.subr.bf16.mxu0 0
        %496 = vmatpush1.bf16.xpose.msra.mxu0 0
        %497 = vmatprep.subr.bf16.mxu0 0
        %498 = vmatpush1.bf16.xpose.msra.mxu0 0
        %499 = vmatprep.subr.bf16.mxu0 0
        %500 = vmatpush1.bf16.xpose.msra.mxu0 0
        %501 = vmatprep.subr.bf16.mxu0 0
        %502 = vmatpush1.bf16.xpose.msra.mxu0 0
        %503 = vmatprep.subr.bf16.mxu0 0
        %504 = vmatpush1.bf16.xpose.msra.mxu0 0
        %505 = vmatprep.subr.bf16.mxu0 0
        %506 = vmatpush1.bf16.xpose.msra.mxu0 0
        %507 = vmatprep.subr.bf16.mxu0 0
        %508 = vmatpush1.bf16.xpose.msra.mxu0 0
        %509 = vmatprep.subr.bf16.mxu0 0
        %510 = vmatpush1.bf16.xpose.msra.mxu0 0
        %511 = vmatprep.subr.bf16.mxu0 0
        %512 = vmatpush1.bf16.xpose.msra.mxu0 0
        %513 = vmatprep.subr.bf16.mxu0 0
        %514 = vmatpush1.bf16.xpose.msra.mxu0 0
        %515 = vmatprep.mubr.bf16.mxu0 0
        %516 = vmatmul.mubr.bf16.gmra.mrb[0].mxu0 %v481
        %v517 = vpop.f32.mrb[0].mxu0
        %v518 = vadd.f32 0.0, %v517
        %v519 = vpop.f32.mrb[0].mxu0
        %v520 = vpop.f32.mrb[0].mxu0
        %v521 = vpop.f32.mrb[0].mxu0
        %522 = vdwg.mxu0
        %v523 = vsel %vm420, %v518, -inf
        %524 = vmax.xlane.f32.xlu0 %v523
        %v525 = vpop.xlane.xlu0 %524
        %v526 = vsub.f32 %v518, %v525
        %v527 = vmul.f32 %v526, 1.442695
        %v528 = vpow.pop %v527
        %v529 = vsel %vm420, %v528, 0.0
        %530 = vadd.xlane.f32.xlu0 %v529
        %v531 = vpop.xlane.xlu0 %530
        %v532 = vpack.c.bf16 %v528, %v528
        %v534 = vsel %vm420, %v532, 0
        %536 = vmatprep.subr.bf16.mxu0 0
        %537 = vmatpush1.bf16.msra.mxu0 %v369
        %538 = vmatprep.subr.bf16.mxu0 0
        %539 = vmatpush1.bf16.msra.mxu0 0
        %540 = vmatprep.subr.bf16.mxu0 0
        %541 = vmatpush1.bf16.msra.mxu0 0
        %542 = vmatprep.subr.bf16.mxu0 0
        %543 = vmatpush1.bf16.msra.mxu0 0
        %544 = vmatprep.subr.bf16.mxu0 0
        %545 = vmatpush1.bf16.msra.mxu0 0
        %546 = vmatprep.subr.bf16.mxu0 0
        %547 = vmatpush1.bf16.msra.mxu0 0
        %548 = vmatprep.subr.bf16.mxu0 0
        %549 = vmatpush1.bf16.msra.mxu0 0
        %550 = vmatprep.subr.bf16.mxu0 0
        %551 = vmatpush1.bf16.msra.mxu0 0
        %552 = vmatprep.subr.bf16.mxu0 0
        %553 = vmatpush1.bf16.msra.mxu0 0
        %554 = vmatprep.subr.bf16.mxu0 0
        %555 = vmatpush1.bf16.msra.mxu0 0
        %556 = vmatprep.subr.bf16.mxu0 0
        %557 = vmatpush1.bf16.msra.mxu0 0
        %558 = vmatprep.subr.bf16.mxu0 0
        %559 = vmatpush1.bf16.msra.mxu0 0
        %560 = vmatprep.subr.bf16.mxu0 0
        %561 = vmatpush1.bf16.msra.mxu0 0
        %562 = vmatprep.subr.bf16.mxu0 0
        %563 = vmatpush1.bf16.msra.mxu0 0
        %564 = vmatprep.subr.bf16.mxu0 0
        %565 = vmatpush1.bf16.msra.mxu0 0
        %566 = vmatprep.subr.bf16.mxu0 0
        %567 = vmatpush1.bf16.msra.mxu0 0
        %568 = vmatprep.mubr.bf16.mxu0 0
        %569 = vmatmul.mubr.bf16.gmra.mrb[0].mxu0 %v534
        %v570 = vpop.f32.mrb[0].mxu0
        %v571 = vadd.f32 0.0, %v570
        %v572 = vpop.f32.mrb[0].mxu0
        %v573 = vpop.f32.mrb[0].mxu0
        %v574 = vpop.f32.mrb[0].mxu0
        %575 = vdwg.mxu0
        %v576 = vrcp.pop %v531
        %v577 = vmul.f32 %v571, %v576
        %v578 = vpack.c.bf16 %v577, %v577
        %s579 = scalar_lea.vmem %s3, 4
        %v580 = vld [vmem:[%s579] sm:$0xf]
        %v582 = vsel %vm373, %v578, 0
        %vm584 = vcmask 1043456
        %v586 = vsel %vm584, %v580, 0
        %588 = vmatprep.subr.bf16.mxu0 0
        %589 = vmatpush1.bf16.msra.mxu0 %v586
        %590 = vmatprep.subr.bf16.mxu0 0
        %591 = vmatpush1.bf16.msra.mxu0 0
        %592 = vmatprep.subr.bf16.mxu0 0
        %593 = vmatpush1.bf16.msra.mxu0 0
        %594 = vmatprep.subr.bf16.mxu0 0
        %595 = vmatpush1.bf16.msra.mxu0 0
        %596 = vmatprep.subr.bf16.mxu0 0
        %597 = vmatpush1.bf16.msra.mxu0 0
        %598 = vmatprep.subr.bf16.mxu0 0
        %599 = vmatpush1.bf16.msra.mxu0 0
        %600 = vmatprep.subr.bf16.mxu0 0
        %601 = vmatpush1.bf16.msra.mxu0 0
        %602 = vmatprep.subr.bf16.mxu0 0
        %603 = vmatpush1.bf16.msra.mxu0 0
        %604 = vmatprep.subr.bf16.mxu0 0
        %605 = vmatpush1.bf16.msra.mxu0 0
        %606 = vmatprep.subr.bf16.mxu0 0
        %607 = vmatpush1.bf16.msra.mxu0 0
        %608 = vmatprep.subr.bf16.mxu0 0
        %609 = vmatpush1.bf16.msra.mxu0 0
        %610 = vmatprep.subr.bf16.mxu0 0
        %611 = vmatpush1.bf16.msra.mxu0 0
        %612 = vmatprep.subr.bf16.mxu0 0
        %613 = vmatpush1.bf16.msra.mxu0 0
        %614 = vmatprep.subr.bf16.mxu0 0
        %615 = vmatpush1.bf16.msra.mxu0 0
        %616 = vmatprep.subr.bf16.mxu0 0
        %617 = vmatpush1.bf16.msra.mxu0 0
        %618 = vmatprep.subr.bf16.mxu0 0
        %619 = vmatpush1.bf16.msra.mxu0 0
        %620 = vmatprep.mubr.bf16.mxu0 0
        %621 = vmatmul.mubr.bf16.gmra.mrb[0].mxu0 %v582
        %v622 = vpop.f32.mrb[0].mxu0
        %v623 = vadd.f32 0.0, %v622
        %v624 = vpop.f32.mrb[0].mxu0
        %v625 = vpop.f32.mrb[0].mxu0
        %v626 = vpop.f32.mrb[0].mxu0
        %627 = vdwg.mxu0
        %v629 = vsel %vm373, %v476, 0
        %v632 = vsel %vm584, %v477, 0
        %634 = vmatprep.subr.bf16.mxu0 0
        %635 = vmatpush1.bf16.msra.mxu0 %v632
        %636 = vmatprep.subr.bf16.mxu0 0
        %637 = vmatpush1.bf16.msra.mxu0 0
        %638 = vmatprep.subr.bf16.mxu0 0
        %639 = vmatpush1.bf16.msra.mxu0 0
        %640 = vmatprep.subr.bf16.mxu0 0
        %641 = vmatpush1.bf16.msra.mxu0 0
        %642 = vmatprep.subr.bf16.mxu0 0
        %643 = vmatpush1.bf16.msra.mxu0 0
        %644 = vmatprep.subr.bf16.mxu0 0
        %645 = vmatpush1.bf16.msra.mxu0 0
        %646 = vmatprep.subr.bf16.mxu0 0
        %647 = vmatpush1.bf16.msra.mxu0 0
        %648 = vmatprep.subr.bf16.mxu0 0
        %649 = vmatpush1.bf16.msra.mxu0 0
        %650 = vmatprep.subr.bf16.mxu0 0
        %651 = vmatpush1.bf16.msra.mxu0 0
        %652 = vmatprep.subr.bf16.mxu0 0
        %653 = vmatpush1.bf16.msra.mxu0 0
        %654 = vmatprep.subr.bf16.mxu0 0
        %655 = vmatpush1.bf16.msra.mxu0 0
        %656 = vmatprep.subr.bf16.mxu0 0
        %657 = vmatpush1.bf16.msra.mxu0 0
        %658 = vmatprep.subr.bf16.mxu0 0
        %659 = vmatpush1.bf16.msra.mxu0 0
        %660 = vmatprep.subr.bf16.mxu0 0
        %661 = vmatpush1.bf16.msra.mxu0 0
        %662 = vmatprep.subr.bf16.mxu0 0
        %663 = vmatpush1.bf16.msra.mxu0 0
        %664 = vmatprep.subr.bf16.mxu0 0
        %665 = vmatpush1.bf16.msra.mxu0 0
        %666 = vmatprep.mubr.bf16.mxu0 0
        %667 = vmatmul.mubr.bf16.gmra.mrb[0].mxu0 %v629
        %v668 = vpop.f32.mrb[0].mxu0
        %v669 = vadd.f32 %v623, %v668
        %v670 = vpop.f32.mrb[0].mxu0
        %v671 = vpop.f32.mrb[0].mxu0
        %v672 = vpop.f32.mrb[0].mxu0
        %673 = vdwg.mxu0
        %674 = vst.msk [vmem:[%s245] sm:$0xff] %vm248, %v669
        %s675 = sand.u32 %s135, 1
        %s676 = scalar_lea.sflag [#allocation6], %s675
        %s677 = sand.u32 %s135, 1
        %s678 = smul.addr %s677, 8
        %s679 = scalar_lea.vmem [#allocation9], %s678
        // Predicated region
        $region57: #{tpu_custom_call.1} parent=35 // pred_check
          %p680 = pneg %p145
        $region58: #{tpu_custom_call.1} parent=35 // pred_check_branch
          %682 = sbr.rel (%p680) target = $region60
        $region59: #{tpu_custom_call.1} parent=35 // pred_region
          %s684 = ssub.s32 128, 128
          %685 = vsyncadd %s676, %s684
          %s686 = smul.addr %s26, 2
          %s687 = sadd.s32 %s27, %s686
          %s688 = smul.addr %s687, 128
          %s689 = scalar_lea.hbm %s4, %s688
          %s691 = sshll.u32 %s679, 4
          %s692 = int_to_ptr.vmem [resolvable:$true] %s691
          %694 = dma.vmem_to_hbm [thread:$0]  %s692, 128, %s689, %s676
        $region60: #{tpu_custom_call.1} parent=35 // pred_fallthru
          _
      $region36: #{tpu_custom_call.1} parent=5 // pred_fallthru
        _
      %p695 = scmp.le.s32.totalorder 2, %s17
      // Predicated region
      $region61: #{tpu_custom_call.1} parent=5 // pred_check
        %p696 = pneg %p695
      $region62: #{tpu_custom_call.1} parent=5 // pred_check_branch
        %698 = sbr.rel (%p696) target = $region64
      $region63: #{tpu_custom_call.1} parent=5 // pred_region
        %s699 = ssub.s32 %s17, 2
        // Predicated region
        $region65: #{tpu_custom_call.1} parent=63 // pred_check
          %p700 = pneg %p151
        $region66: #{tpu_custom_call.1} parent=63 // pred_check_branch
          %702 = sbr.rel (%p700) target = $region68
        $region67: #{tpu_custom_call.1} parent=63 // pred_region
          %s703 = sand.u32 %s136, 1
          %s704 = scalar_lea.sflag [#allocation6], %s703
          %s705 = sand.u32 %s136, 1
          %s706 = smul.addr %s705, 8
          %s707 = scalar_lea.vmem [#allocation9], %s706
          %708 = dma.done %s704, 128
        $region68: #{tpu_custom_call.1} parent=63 // pred_fallthru
          _
      $region64: #{tpu_custom_call.1} parent=5 // pred_fallthru
        _
    $region6: #{tpu_custom_call.1} parent=1 // loop_footer
      %s21 = sadd.s32 1, %s17
    $region7: #{tpu_custom_call.1} parent=1 // loop_footer_branch
      %16 = sbr.rel target = $region3
    $region8: #{tpu_custom_call.1} parent=1 // loop_exit
      _
    %709 = vsyncpa [#allocation5], 1
    %s710 = scalar_lea.sflag [#allocation5], 1
    %711 = vsyncpa %s710, 1
    %712 = vsyncpa [#allocation8], 1
    %713 = vsyncpa [#allocation6], 1
    %s714 = scalar_lea.sflag [#allocation6], 1
    %715 = vsyncpa %s714, 1

</llo_original>
